<compile_context>
chip_gen: v7x
topology: tpu7x:2x2x1
jax: 0.10.0
libtpu: 0.0.40
codegen_flags: <defaults>
</compile_context>

<pallas_src>
import jax
import jax.numpy as jnp
from jax import lax
from jax.experimental import pallas as pl
from jax.experimental.pallas import tpu as pltpu

BLOCK_SIZE = 128      # block_size (PROD = False)
N_EMBD = 64           # n_embd     (PROD = False)
DROPOUT = 0.2         # eval-mode dropout == identity (see TODO below)


def head_kernel(x_ref, wk_ref, wq_ref, wv_ref, o_ref):
    # x_ref: (1, T, C)   w*_ref: (C, H)   o_ref: (1, T, H)   (one batch / step)
    T = x_ref.shape[1]
    H = wk_ref.shape[1]

    x2d = x_ref[0]                                              # (T, C)

    # --- three tile-aligned projection matmuls (no fused-slab slicing) ------
    k = jnp.dot(x2d, wk_ref[...], preferred_element_type=jnp.float32)  # (T, H)
    q = jnp.dot(x2d, wq_ref[...], preferred_element_type=jnp.float32)  # (T, H)
    v = jnp.dot(x2d, wv_ref[...], preferred_element_type=jnp.float32)  # (T, H)

    scale = H ** -0.5

    # --- scores: contract over H (Mosaic inserts the minimal (T,16) k relayout)
    wei = lax.dot_general(
        q, k,
        dimension_numbers=(((1,), (1,)), ((), ())),
        preferred_element_type=jnp.float32) * scale             # (Tq, Tk)

    # --- causal mask + numerically stable, *unnormalized* softmax -----------
    row = lax.broadcasted_iota(jnp.int32, (T, T), 0)
    col = lax.broadcasted_iota(jnp.int32, (T, T), 1)
    wei = jnp.where(col <= row, wei, -jnp.inf)

    m = jnp.max(wei, axis=-1, keepdims=True)                    # (T, 1)
    p = jnp.exp(wei - m)                                        # masked -> 0
    denom = jnp.sum(p, axis=-1, keepdims=True)                  # (T, 1)

    # TODO(synk): dropout(p=0.2) on the attention weights is identity in eval
    # mode; training-mode stochastic dropout is not reproduced here.

    # --- PV matmul in natural MXU orientation, then deferred normalization --
    out_un = jnp.dot(p, v, preferred_element_type=jnp.float32)  # (T, H)
    out = out_un * pl.reciprocal(denom, approx=True)            # EUP, (T, H) mul
    o_ref[0] = out.astype(o_ref.dtype)


def head_forward(x, w_key, w_query, w_value):
    """Single self-attention head (eval mode).

    x:        (B, T, C) float32
    w_key/w_query/w_value: (C, head_size) float32 — already transposed so the
        projection is x @ W (equivalent to PyTorch nn.Linear(C, H, bias=False)).
    returns:  (B, T, head_size) float32
    """
    B, T, C = x.shape
    H = w_key.shape[1]

    flops = 2 * (B * T * C * 3 * H + 2 * B * T * T * H)
    bytes_accessed = 4 * (B * T * C + 3 * C * H + B * T * H)
    transcendentals = B * T * T

    return pl.pallas_call(
        head_kernel,
        out_shape=jax.ShapeDtypeStruct((B, T, H), x.dtype),
        grid=(B,),
        in_specs=[
            pl.BlockSpec((1, T, C), lambda b: (b, 0, 0)),
            pl.BlockSpec((C, H), lambda b: (0, 0)),
            pl.BlockSpec((C, H), lambda b: (0, 0)),
            pl.BlockSpec((C, H), lambda b: (0, 0)),
        ],
        out_specs=pl.BlockSpec((1, T, H), lambda b: (b, 0, 0)),
        compiler_params=pltpu.CompilerParams(
            dimension_semantics=("parallel",)),
        cost_estimate=pl.CostEstimate(
            flops=flops,
            transcendentals=transcendentals,
            bytes_accessed=bytes_accessed),
    )(x, w_key, w_query, w_value)


if __name__ == "__main__":
    key = jax.random.PRNGKey(0)
    B, T, C = 2, BLOCK_SIZE, N_EMBD
    head_size = 16

    k_x, k_wk, k_wq, k_wv = jax.random.split(key, 4)
    x = jax.random.normal(k_x, (B, T, C), dtype=jnp.float32)
    # deterministic "Linear" weights, stored as (C, head_size) so y = x @ W
    bound = 1.0 / (C ** 0.5)
    w_key = jax.random.uniform(k_wk, (C, head_size), jnp.float32, -bound, bound)
    w_query = jax.random.uniform(k_wq, (C, head_size), jnp.float32, -bound, bound)
    w_value = jax.random.uniform(k_wv, (C, head_size), jnp.float32, -bound, bound)

    out = head_forward(x, w_key, w_query, w_value)
    jax.block_until_ready(out)

    # quick self-check against plain-JAX reference
    def ref(x, wk, wq, wv):
        k = x @ wk
        q = x @ wq
        v = x @ wv
        wei = (q @ jnp.swapaxes(k, -2, -1)) * (k.shape[-1] ** -0.5)
        mask = jnp.tril(jnp.ones((T, T), bool))
        wei = jnp.where(mask, wei, -jnp.inf)
        wei = jax.nn.softmax(wei, axis=-1)
        return wei @ v

    expected = ref(x, w_key, w_query, w_value)
    assert out.shape == (B, T, head_size)
    # approx=True reciprocal (EUP) perturbs at the ~1e-3 relative level.
    assert jnp.allclose(out, expected, atol=2e-3, rtol=2e-3)

    print("KERNEL_OK")
</pallas_src>

<mosaic_0001>
module attributes {stable_mosaic.version = 11 : i64} {
  func.func @head_kernel(%arg0: i32, %arg1: memref<1x128x64xf32, #tpu.memory_space<vmem>>, %arg2: memref<64x16xf32, #tpu.memory_space<vmem>>, %arg3: memref<64x16xf32, #tpu.memory_space<vmem>>, %arg4: memref<64x16xf32, #tpu.memory_space<vmem>>, %arg5: memref<1x128x16xf32, #tpu.memory_space<vmem>>) attributes {dimension_semantics = [#tpu.dimension_semantics<parallel>], iteration_bounds = array<i64: 2>, scalar_prefetch = 0 : i64, scratch_operands = 0 : i64, tpu.core_type = #tpu.core_type<tc>, window_params = [{transform_indices = @transform_0, window_bounds = array<i64: 1, 128, 64>}, {pipeline_mode = #tpu.pipeline_mode<synchronous>, transform_indices = @transform_1, window_bounds = array<i64: 64, 16>}, {pipeline_mode = #tpu.pipeline_mode<synchronous>, transform_indices = @transform_2, window_bounds = array<i64: 64, 16>}, {pipeline_mode = #tpu.pipeline_mode<synchronous>, transform_indices = @transform_3, window_bounds = array<i64: 64, 16>}, {transform_indices = @transform_4, window_bounds = array<i64: 1, 128, 16>}]} {
    %c0 = arith.constant 0 : index
    %c0_0 = arith.constant 0 : index
    %c0_1 = arith.constant 0 : index
    %0 = vector.load %arg1[%c0, %c0_0, %c0_1] : memref<1x128x64xf32, #tpu.memory_space<vmem>>, vector<1x128x64xf32>
    %1 = vector.shape_cast %0 : vector<1x128x64xf32> to vector<128x64xf32>
    %c0_2 = arith.constant 0 : index
    %c0_3 = arith.constant 0 : index
    %2 = vector.load %arg2[%c0_2, %c0_3] : memref<64x16xf32, #tpu.memory_space<vmem>>, vector<64x16xf32>
    %cst = arith.constant dense<0.000000e+00> : vector<128x16xf32>
    %3 = tpu.matmul %1, %2, %cst {dimension_numbers = #tpu.dot_dimension_numbers<[1], [0], [0], [1], [0, 0, 1, 1], [], []>} : vector<128x64xf32>, vector<64x16xf32>, vector<128x16xf32> -> vector<128x16xf32>
    %c0_4 = arith.constant 0 : index
    %c0_5 = arith.constant 0 : index
    %4 = vector.load %arg3[%c0_4, %c0_5] : memref<64x16xf32, #tpu.memory_space<vmem>>, vector<64x16xf32>
    %cst_6 = arith.constant dense<0.000000e+00> : vector<128x16xf32>
    %5 = tpu.matmul %1, %4, %cst_6 {dimension_numbers = #tpu.dot_dimension_numbers<[1], [0], [0], [1], [0, 0, 1, 1], [], []>} : vector<128x64xf32>, vector<64x16xf32>, vector<128x16xf32> -> vector<128x16xf32>
    %c0_7 = arith.constant 0 : index
    %c0_8 = arith.constant 0 : index
    %6 = vector.load %arg4[%c0_7, %c0_8] : memref<64x16xf32, #tpu.memory_space<vmem>>, vector<64x16xf32>
    %cst_9 = arith.constant dense<0.000000e+00> : vector<128x16xf32>
    %7 = tpu.matmul %1, %6, %cst_9 {dimension_numbers = #tpu.dot_dimension_numbers<[1], [0], [0], [1], [0, 0, 1, 1], [], []>} : vector<128x64xf32>, vector<64x16xf32>, vector<128x16xf32> -> vector<128x16xf32>
    %cst_10 = arith.constant dense<0.000000e+00> : vector<128x128xf32>
    %8 = tpu.matmul %5, %3, %cst_10 {dimension_numbers = #tpu.dot_dimension_numbers<[1], [1], [0], [0], [0, 0, 1, 0], [], []>} : vector<128x16xf32>, vector<128x16xf32>, vector<128x128xf32> -> vector<128x128xf32>
    %cst_11 = arith.constant 2.500000e-01 : f32
    %9 = vector.broadcast %cst_11 : f32 to vector<128x128xf32>
    %10 = arith.mulf %8, %9 : vector<128x128xf32>
    %11 = tpu.iota {dimensions = array<i32: 0>} : vector<128x128xi32>
    %12 = tpu.iota {dimensions = array<i32: 1>} : vector<128x128xi32>
    %13 = arith.cmpi sle, %12, %11 : vector<128x128xi32>
    %cst_12 = arith.constant 0xFF800000 : f32
    %14 = vector.broadcast %cst_12 : f32 to vector<128x128xf32>
    %15 = arith.select %13, %10, %14 : vector<128x128xi1>, vector<128x128xf32>
    %cst_13 = arith.constant dense<0xFF800000> : vector<128xf32>
    %16 = vector.multi_reduction <maximumf>, %15, %cst_13 [1] : vector<128x128xf32> to vector<128xf32>
    %17 = vector.shape_cast %16 : vector<128xf32> to vector<128x1xf32>
    %18 = vector.broadcast %17 : vector<128x1xf32> to vector<128x128xf32>
    %19 = arith.subf %15, %18 : vector<128x128xf32>
    %20 = math.exp %19 : vector<128x128xf32>
    %cst_14 = arith.constant dense<0.000000e+00> : vector<128xf32>
    %21 = vector.multi_reduction <add>, %20, %cst_14 [1] : vector<128x128xf32> to vector<128xf32>
    %22 = vector.shape_cast %21 : vector<128xf32> to vector<128x1xf32>
    %cst_15 = arith.constant dense<0.000000e+00> : vector<128x16xf32>
    %23 = tpu.matmul %20, %7, %cst_15 {dimension_numbers = #tpu.dot_dimension_numbers<[1], [0], [0], [1], [0, 0, 1, 1], [], []>} : vector<128x128xf32>, vector<128x16xf32>, vector<128x16xf32> -> vector<128x16xf32>
    %24 = tpu.reciprocal %22 {approx = true} : vector<128x1xf32> -> vector<128x1xf32>
    %25 = vector.broadcast %24 : vector<128x1xf32> to vector<128x16xf32>
    %26 = arith.mulf %23, %25 : vector<128x16xf32>
    %c0_16 = arith.constant 0 : index
    %c0_17 = arith.constant 0 : index
    %c0_18 = arith.constant 0 : index
    %27 = vector.load %arg5[%c0_16, %c0_17, %c0_18] : memref<1x128x16xf32, #tpu.memory_space<vmem>>, vector<1x128x16xf32>
    %28 = vector.shape_cast %27 : vector<1x128x16xf32> to vector<128x16xf32>
    %29 = vector.shape_cast %26 : vector<128x16xf32> to vector<1x128x16xf32>
    tpu.vector_store %arg5[%c0_16, %c0_17, %c0_18], %29 {strides = array<i32>} : memref<1x128x16xf32, #tpu.memory_space<vmem>>, vector<1x128x16xf32>,
    return
  }
  func.func @transform_0(%arg0: i32) -> (i32, i32, i32) {
    %c0_i32 = arith.constant 0 : i32
    %c0_i32_0 = arith.constant 0 : i32
    %c0_i32_1 = arith.constant 0 : i32
    return %arg0, %c0_i32, %c0_i32_0 : i32, i32, i32
  }
  func.func @transform_1(%arg0: i32) -> (i32, i32) {
    %c0_i32 = arith.constant 0 : i32
    %c0_i32_0 = arith.constant 0 : i32
    %c0_i32_1 = arith.constant 0 : i32
    return %c0_i32, %c0_i32_0 : i32, i32
  }
  func.func @transform_2(%arg0: i32) -> (i32, i32) {
    %c0_i32 = arith.constant 0 : i32
    %c0_i32_0 = arith.constant 0 : i32
    %c0_i32_1 = arith.constant 0 : i32
    return %c0_i32, %c0_i32_0 : i32, i32
  }
  func.func @transform_3(%arg0: i32) -> (i32, i32) {
    %c0_i32 = arith.constant 0 : i32
    %c0_i32_0 = arith.constant 0 : i32
    %c0_i32_1 = arith.constant 0 : i32
    return %c0_i32, %c0_i32_0 : i32, i32
  }
  func.func @transform_4(%arg0: i32) -> (i32, i32, i32) {
    %c0_i32 = arith.constant 0 : i32
    %c0_i32_0 = arith.constant 0 : i32
    %c0_i32_1 = arith.constant 0 : i32
    return %arg0, %c0_i32, %c0_i32_0 : i32, i32, i32
  }
}

</mosaic_0001>

<llo_original>
// kernel: tpu_custom_call.1
$region0: #{tpu_custom_call.1}
  #allocation0 [shape = 'u32[]', space=smem, size = 0x4, offset = 0x4, fixed_abs, tag = 'smem constant byte address 0x4 - core index']
  #allocation1 [shape = 'u32[144,128]{1,0:T(1,128)}', space=vmem, size = 0x12000, scoped, tag = 'internal scratch']
  %s0 = inlined_call_operand.vmem [shape: f32[2,128,64], index: 0, kind: input, shape index: {}]
  %s1 = inlined_call_operand.vmem [shape: f32[64,16], index: 1, kind: input, shape index: {}]
  %s2 = inlined_call_operand.vmem [shape: f32[64,16], index: 2, kind: input, shape index: {}]
  %s3 = inlined_call_operand.vmem [shape: f32[64,16], index: 3, kind: input, shape index: {}]
  %s4 = inlined_call_operand.vmem [shape: f32[2,128,16], index: 4, kind: output, shape index: {}]
  %s5 = sld [smem:[#allocation0]]
  $region49: #{tpu_custom_call.1} parent=0
    _
  %s7 = ssub.s32 1, %s5
  %s8 = scalar_select 0, %s7, %s5
  loop: start=0, step=1, limit=4
  $region2: #{tpu_custom_call.1} parent=0 // loop_pre_header
    _
  $region3: #{tpu_custom_call.1} parent=0 // loop_header
    %s10 = sphi 0, %s14
    %p11 = scmp.ge.s32.totalorder %s10, 4
    %s20 = sphi 0, %s22
    %s23 = sphi 0, %s20
    %s24 = sphi 0, %s23
    %s40 = sphi 0, %s24
    %s44 = sphi 0, %s44
    %s46 = sphi 0, %s44
    %s47 = sphi 0, %s46
    %s61 = sphi 0, %s47
    %s65 = sphi 0, %s65
    %s67 = sphi 0, %s65
    %s68 = sphi 0, %s67
    %s82 = sphi 0, %s68
    %s86 = sphi 0, %s86
    %s88 = sphi 0, %s86
    %s89 = sphi 0, %s88
    %s103 = sphi 0, %s89
    %s109 = sphi 0, %s111
    %s112 = sphi 0, %s109
    %s113 = sphi 0, %s112
    %s129 = sphi 0, %s113
  $region4: #{tpu_custom_call.1} parent=0 // loop_header_branch
    %13 = sbr.rel (%p11) target = $region8
  $region5: #{tpu_custom_call.1} parent=0 // loop_body
    %s15 = ssub.s32 %s10, 1
    %s16 = ssub.s32 %s10, 2
    %s17 = sadd.s32 %s10, 1
    %s18 = ssub.s32 %s10, %s17
    %p19 = scmp.eq.s32.totalorder %s18, 0
    %s21 = sadd.s32 %s20, 1
    %s22 = scalar_select %p19, %s20, %s21
    %p25 = pneg %p19
    %p26 = scmp.eq.s32.totalorder %s10, 1
    %p27 = por %p25, %p26
    %p28 = scmp.ne.s32.totalorder %s20, %s23
    %p29 = scmp.eq.s32.totalorder %s10, 0
    %p30 = por %p28, %p29
    %p31 = scmp.ne.s32.totalorder %s20, %s23
    %p32 = scmp.eq.s32.totalorder %s15, 1
    %p33 = por %p31, %p32
    %p34 = scmp.ne.s32.totalorder %s23, %s24
    %p35 = scmp.eq.s32.totalorder %s15, 0
    %p36 = por %p34, %p35
    %p37 = scmp.ne.s32.totalorder %s23, %s24
    %p38 = scmp.eq.s32.totalorder %s16, 1
    %p39 = por %p37, %p38
    %p41 = scmp.ne.s32.totalorder %s24, %s40
    %p42 = scmp.eq.s32.totalorder %s16, 0
    %p43 = por %p41, %p42
    %s45 = sadd.s32 %s44, 1
    %p48 = scmp.eq.s32.totalorder %s10, 1
    %p49 = scmp.ne.s32.totalorder %s44, %s46
    %p50 = scmp.eq.s32.totalorder %s10, 0
    %p51 = por %p49, %p50
    %p52 = scmp.ne.s32.totalorder %s44, %s46
    %p53 = scmp.eq.s32.totalorder %s15, 1
    %p54 = por %p52, %p53
    %p55 = scmp.ne.s32.totalorder %s46, %s47
    %p56 = scmp.eq.s32.totalorder %s15, 0
    %p57 = por %p55, %p56
    %p58 = scmp.ne.s32.totalorder %s46, %s47
    %p59 = scmp.eq.s32.totalorder %s16, 1
    %p60 = por %p58, %p59
    %p62 = scmp.ne.s32.totalorder %s47, %s61
    %p63 = scmp.eq.s32.totalorder %s16, 0
    %p64 = por %p62, %p63
    %s66 = sadd.s32 %s65, 1
    %p69 = scmp.eq.s32.totalorder %s10, 1
    %p70 = scmp.ne.s32.totalorder %s65, %s67
    %p71 = scmp.eq.s32.totalorder %s10, 0
    %p72 = por %p70, %p71
    %p73 = scmp.ne.s32.totalorder %s65, %s67
    %p74 = scmp.eq.s32.totalorder %s15, 1
    %p75 = por %p73, %p74
    %p76 = scmp.ne.s32.totalorder %s67, %s68
    %p77 = scmp.eq.s32.totalorder %s15, 0
    %p78 = por %p76, %p77
    %p79 = scmp.ne.s32.totalorder %s67, %s68
    %p80 = scmp.eq.s32.totalorder %s16, 1
    %p81 = por %p79, %p80
    %p83 = scmp.ne.s32.totalorder %s68, %s82
    %p84 = scmp.eq.s32.totalorder %s16, 0
    %p85 = por %p83, %p84
    %s87 = sadd.s32 %s86, 1
    %p90 = scmp.eq.s32.totalorder %s10, 1
    %p91 = scmp.ne.s32.totalorder %s86, %s88
    %p92 = scmp.eq.s32.totalorder %s10, 0
    %p93 = por %p91, %p92
    %p94 = scmp.ne.s32.totalorder %s86, %s88
    %p95 = scmp.eq.s32.totalorder %s15, 1
    %p96 = por %p94, %p95
    %p97 = scmp.ne.s32.totalorder %s88, %s89
    %p98 = scmp.eq.s32.totalorder %s15, 0
    %p99 = por %p97, %p98
    %p100 = scmp.ne.s32.totalorder %s88, %s89
    %p101 = scmp.eq.s32.totalorder %s16, 1
    %p102 = por %p100, %p101
    %p104 = scmp.ne.s32.totalorder %s89, %s103
    %p105 = scmp.eq.s32.totalorder %s16, 0
    %p106 = por %p104, %p105
    %s107 = ssub.s32 %s10, %s17
    %p108 = scmp.eq.s32.totalorder %s107, 0
    %s110 = sadd.s32 %s109, 1
    %s111 = scalar_select %p108, %s109, %s110
    %p114 = pneg %p108
    %p115 = scmp.eq.s32.totalorder %s10, 1
    %p116 = por %p114, %p115
    %p117 = scmp.ne.s32.totalorder %s109, %s112
    %p118 = scmp.eq.s32.totalorder %s10, 0
    %p119 = por %p117, %p118
    %p120 = scmp.ne.s32.totalorder %s109, %s112
    %p121 = scmp.eq.s32.totalorder %s15, 1
    %p122 = por %p120, %p121
    %p123 = scmp.ne.s32.totalorder %s112, %s113
    %p124 = scmp.eq.s32.totalorder %s15, 0
    %p125 = por %p123, %p124
    %p126 = scmp.ne.s32.totalorder %s112, %s113
    %p127 = scmp.eq.s32.totalorder %s16, 1
    %p128 = por %p126, %p127
    %p130 = scmp.ne.s32.totalorder %s113, %s129
    %p131 = scmp.eq.s32.totalorder %s16, 0
    %p132 = por %p130, %p131
    %p133 = scmp.le.s32.totalorder 1, %s10
    %p134 = scmp.lt.s32.totalorder %s10, 3
    %p135 = pnand %p133, %p134
    %p136 = pneg %p135
    // Predicated region
    $region9: #{tpu_custom_call.1} parent=5 // pred_check
      _
    $region10: #{tpu_custom_call.1} parent=5 // pred_check_branch
      %138 = sbr.rel (%p135) target = $region12
    $region11: #{tpu_custom_call.1} parent=5 // pred_region
      %s139 = ssub.s32 %s10, 1
      // Predicated region
      $region13: #{tpu_custom_call.1} parent=11 // pred_check
        %p140 = pneg %p57
      $region14: #{tpu_custom_call.1} parent=11 // pred_check_branch
        %142 = sbr.rel (%p140) target = $region16
      $region15: #{tpu_custom_call.1} parent=11 // pred_region
        _
      $region16: #{tpu_custom_call.1} parent=11 // pred_fallthru
        _
      // Predicated region
      $region17: #{tpu_custom_call.1} parent=11 // pred_check
        %p143 = pneg %p78
      $region18: #{tpu_custom_call.1} parent=11 // pred_check_branch
        %145 = sbr.rel (%p143) target = $region20
      $region19: #{tpu_custom_call.1} parent=11 // pred_region
        _
      $region20: #{tpu_custom_call.1} parent=11 // pred_fallthru
        _
      // Predicated region
      $region21: #{tpu_custom_call.1} parent=11 // pred_check
        %p146 = pneg %p99
      $region22: #{tpu_custom_call.1} parent=11 // pred_check_branch
        %148 = sbr.rel (%p146) target = $region24
      $region23: #{tpu_custom_call.1} parent=11 // pred_region
        _
      $region24: #{tpu_custom_call.1} parent=11 // pred_fallthru
        _
    $region12: #{tpu_custom_call.1} parent=5 // pred_fallthru
      _
    %p149 = scmp.lt.s32.totalorder %s10, 2
    // Predicated region
    $region25: #{tpu_custom_call.1} parent=5 // pred_check
      %p150 = pneg %p149
    $region26: #{tpu_custom_call.1} parent=5 // pred_check_branch
      %152 = sbr.rel (%p150) target = $region28
    $region27: #{tpu_custom_call.1} parent=5 // pred_region
      // Predicated region
      $region29: #{tpu_custom_call.1} parent=27 // pred_check
        %p153 = pneg %p30
      $region30: #{tpu_custom_call.1} parent=27 // pred_check_branch
        %155 = sbr.rel (%p153) target = $region32
      $region31: #{tpu_custom_call.1} parent=27 // pred_region
        %p156 = scmp.lt.s32.totalorder %s10, 1
        %s157 = scalar_select %p156, %s10, 1
        %s158 = smul.addr %s157, 16
        %s159 = smul.addr %s158, 8
        %s160 = scalar_lea.vmem %s0, %s159
      $region32: #{tpu_custom_call.1} parent=27 // pred_fallthru
        _
    $region28: #{tpu_custom_call.1} parent=5 // pred_fallthru
      _
    %p161 = scmp.le.s32.totalorder 1, %s10
    %p162 = scmp.lt.s32.totalorder %s10, 3
    %p163 = pnand %p161, %p162
    %p164 = pneg %p163
    // Predicated region
    $region33: #{tpu_custom_call.1} parent=5 // pred_check
      _
    $region34: #{tpu_custom_call.1} parent=5 // pred_check_branch
      %166 = sbr.rel (%p163) target = $region36
    $region35: #{tpu_custom_call.1} parent=5 // pred_region
      %s167 = ssub.s32 %s10, 1
      %p168 = scmp.lt.s32.totalorder %s15, 1
      %s169 = scalar_select %p168, %s15, 1
      %s170 = smul.addr %s169, 16
      %s171 = smul.addr %s170, 8
      %s172 = scalar_lea.vmem %s0, %s171
      %p173 = pneg %p36
      %p174 = pneg %p33
      %p175 = pneg %p57
      %p176 = pneg %p54
      %p177 = pneg %p78
      %p178 = pneg %p75
      %p179 = pneg %p99
      %p180 = pneg %p96
      %p181 = pneg %p125
      %p182 = pneg %p122
      %p183 = scmp.lt.s32.totalorder %s15, 1
      %s184 = scalar_select %p183, %s15, 1
      %s185 = smul.addr %s184, 16
      %s186 = smul.addr %s185, 8
      %s187 = scalar_lea.vmem %s4, %s186
      %p188 = scmp.lt.s32.totalorder %s15, 1
      %s189 = scalar_select %p188, %s15, 1
      %s190 = smul.addr %s189, 16
      %s191 = smul.addr %s190, 8
      %s192 = scalar_lea.vmem %s0, %s191
      %p193 = scmp.lt.s32.totalorder %s15, 1
      %s194 = scalar_select %p193, %s15, 1
      %s195 = smul.addr %s194, 16
      %s196 = smul.addr %s195, 8
      %s197 = scalar_lea.vmem %s4, %s196
      %v198 = vld [vmem:[%s192] sm:$0xff]
      %v199 = vld [vmem:[%s192 + $0x8] sm:$0xff]
      %v200 = vld [vmem:[%s192 + $0x10] sm:$0xff]
      %v201 = vld [vmem:[%s192 + $0x18] sm:$0xff]
      %v202 = vld [vmem:[%s192 + $0x20] sm:$0xff]
      %v203 = vld [vmem:[%s192 + $0x28] sm:$0xff]
      %v204 = vld [vmem:[%s192 + $0x30] sm:$0xff]
      %v205 = vld [vmem:[%s192 + $0x38] sm:$0xff]
      %v206 = vld [vmem:[%s192 + $0x40] sm:$0xff]
      %v207 = vld [vmem:[%s192 + $0x48] sm:$0xff]
      %v208 = vld [vmem:[%s192 + $0x50] sm:$0xff]
      %v209 = vld [vmem:[%s192 + $0x58] sm:$0xff]
      %v210 = vld [vmem:[%s192 + $0x60] sm:$0xff]
      %v211 = vld [vmem:[%s192 + $0x68] sm:$0xff]
      %v212 = vld [vmem:[%s192 + $0x70] sm:$0xff]
      %v213 = vld [vmem:[%s192 + $0x78] sm:$0xff]
      %v214 = vld [vmem:[%s1] sm:$0xff]
      %v215 = vld [vmem:[%s1 + $0x8] sm:$0xff]
      %v216 = vld [vmem:[%s1 + $0x10] sm:$0xff]
      %v217 = vld [vmem:[%s1 + $0x18] sm:$0xff]
      %v218 = vld [vmem:[%s1 + $0x20] sm:$0xff]
      %v219 = vld [vmem:[%s1 + $0x28] sm:$0xff]
      %v220 = vld [vmem:[%s1 + $0x30] sm:$0xff]
      %v221 = vld [vmem:[%s1 + $0x38] sm:$0xff]
      %vm222 = vcmask 523264
      %v224 = vsel %vm222, %v198, 0
      %v227 = vsel %vm222, %v199, 0
      %v230 = vsel %vm222, %v200, 0
      %v233 = vsel %vm222, %v201, 0
      %v236 = vsel %vm222, %v202, 0
      %v239 = vsel %vm222, %v203, 0
      %v242 = vsel %vm222, %v204, 0
      %v245 = vsel %vm222, %v205, 0
      %v248 = vsel %vm222, %v206, 0
      %v251 = vsel %vm222, %v207, 0
      %v254 = vsel %vm222, %v208, 0
      %v257 = vsel %vm222, %v209, 0
      %v260 = vsel %vm222, %v210, 0
      %v263 = vsel %vm222, %v211, 0
      %v266 = vsel %vm222, %v212, 0
      %v269 = vsel %vm222, %v213, 0
      %271 = vmatprep.subr.mxu0 0.0
      %272 = vmatpush1.msra.mxu0 %v214
      %273 = vmatprep.subr.mxu0 0.0
      %274 = vmatpush1.msra.mxu0 %v215
      %275 = vmatprep.subr.mxu0 0.0
      %276 = vmatpush1.msra.mxu0 %v216
      %277 = vmatprep.subr.mxu0 0.0
      %278 = vmatpush1.msra.mxu0 %v217
      %279 = vmatprep.subr.mxu0 0.0
      %280 = vmatpush1.msra.mxu0 %v218
      %281 = vmatprep.subr.mxu0 0.0
      %282 = vmatpush1.msra.mxu0 %v219
      %283 = vmatprep.subr.mxu0 0.0
      %284 = vmatpush1.msra.mxu0 %v220
      %285 = vmatprep.subr.mxu0 0.0
      %286 = vmatpush1.msra.mxu0 %v221
      %287 = vmatprep.subr.mxu0 0.0
      %288 = vmatpush1.msra.mxu0 0.0
      %289 = vmatprep.subr.mxu0 0.0
      %290 = vmatpush1.msra.mxu0 0.0
      %291 = vmatprep.subr.mxu0 0.0
      %292 = vmatpush1.msra.mxu0 0.0
      %293 = vmatprep.subr.mxu0 0.0
      %294 = vmatpush1.msra.mxu0 0.0
      %295 = vmatprep.subr.mxu0 0.0
      %296 = vmatpush1.msra.mxu0 0.0
      %297 = vmatprep.subr.mxu0 0.0
      %298 = vmatpush1.msra.mxu0 0.0
      %299 = vmatprep.subr.mxu0 0.0
      %300 = vmatpush1.msra.mxu0 0.0
      %301 = vmatprep.subr.mxu0 0.0
      %302 = vmatpush1.msra.mxu0 0.0
      %303 = vmatprep.subr.mxu0 0.0
      %304 = vmatpush1.msra.mxu0 0.0
      %305 = vmatprep.subr.mxu0 0.0
      %306 = vmatpush1.msra.mxu0 0.0
      %307 = vmatprep.subr.mxu0 0.0
      %308 = vmatpush1.msra.mxu0 0.0
      %309 = vmatprep.subr.mxu0 0.0
      %310 = vmatpush1.msra.mxu0 0.0
      %311 = vmatprep.subr.mxu0 0.0
      %312 = vmatpush1.msra.mxu0 0.0
      %313 = vmatprep.subr.mxu0 0.0
      %314 = vmatpush1.msra.mxu0 0.0
      %315 = vmatprep.subr.mxu0 0.0
      %316 = vmatpush1.msra.mxu0 0.0
      %317 = vmatprep.subr.mxu0 0.0
      %318 = vmatpush1.msra.mxu0 0.0
      %319 = vmatprep.subr.mxu0 0.0
      %320 = vmatpush1.msra.mxu0 0.0
      %321 = vmatprep.subr.mxu0 0.0
      %322 = vmatpush1.msra.mxu0 0.0
      %323 = vmatprep.subr.mxu0 0.0
      %324 = vmatpush1.msra.mxu0 0.0
      %325 = vmatprep.subr.mxu0 0.0
      %326 = vmatpush1.msra.mxu0 0.0
      %327 = vmatprep.subr.mxu0 0.0
      %328 = vmatpush1.msra.mxu0 0.0
      %329 = vmatprep.subr.mxu0 0.0
      %330 = vmatpush1.msra.mxu0 0.0
      %331 = vmatprep.subr.mxu0 0.0
      %332 = vmatpush1.msra.mxu0 0.0
      %333 = vmatprep.subr.mxu0 0.0
      %334 = vmatpush1.msra.mxu0 0.0
      %335 = vmatprep.mubr.f32.mxu0 0.0
      %336 = vmatmul.mubr.f32.gmra.mrb[0].mxu0 %v224
      %v337 = vpop.f32.mrb[0].mxu0
      %v338 = vadd.f32 0.0, %v337
      %v339 = vpop.f32.mrb[0].mxu0
      %340 = vmatprep.mubr.f32.mxu0 0.0
      %341 = vmatmul.mubr.f32.gmra.mrb[0].mxu0 %v227
      %v342 = vpop.f32.mrb[0].mxu0
      %v343 = vadd.f32 0.0, %v342
      %v344 = vpop.f32.mrb[0].mxu0
      %345 = vmatprep.mubr.f32.mxu0 0.0
      %346 = vmatmul.mubr.f32.gmra.mrb[0].mxu0 %v230
      %v347 = vpop.f32.mrb[0].mxu0
      %v348 = vadd.f32 0.0, %v347
      %v349 = vpop.f32.mrb[0].mxu0
      %350 = vmatprep.mubr.f32.mxu0 0.0
      %351 = vmatmul.mubr.f32.gmra.mrb[0].mxu0 %v233
      %v352 = vpop.f32.mrb[0].mxu0
      %v353 = vadd.f32 0.0, %v352
      %v354 = vpop.f32.mrb[0].mxu0
      %355 = vmatprep.mubr.f32.mxu0 0.0
      %356 = vmatmul.mubr.f32.gmra.mrb[0].mxu0 %v236
      %v357 = vpop.f32.mrb[0].mxu0
      %v358 = vadd.f32 0.0, %v357
      %v359 = vpop.f32.mrb[0].mxu0
      %360 = vmatprep.mubr.f32.mxu0 0.0
      %361 = vmatmul.mubr.f32.gmra.mrb[0].mxu0 %v239
      %v362 = vpop.f32.mrb[0].mxu0
      %v363 = vadd.f32 0.0, %v362
      %v364 = vpop.f32.mrb[0].mxu0
      %365 = vmatprep.mubr.f32.mxu0 0.0
      %366 = vmatmul.mubr.f32.gmra.mrb[0].mxu0 %v242
      %v367 = vpop.f32.mrb[0].mxu0
      %v368 = vadd.f32 0.0, %v367
      %v369 = vpop.f32.mrb[0].mxu0
      %370 = vmatprep.mubr.f32.mxu0 0.0
      %371 = vmatmul.mubr.f32.gmra.mrb[0].mxu0 %v245
      %v372 = vpop.f32.mrb[0].mxu0
      %v373 = vadd.f32 0.0, %v372
      %v374 = vpop.f32.mrb[0].mxu0
      %375 = vmatprep.mubr.f32.mxu0 0.0
      %376 = vmatmul.mubr.f32.gmra.mrb[0].mxu0 %v248
      %v377 = vpop.f32.mrb[0].mxu0
      %v378 = vadd.f32 0.0, %v377
      %v379 = vpop.f32.mrb[0].mxu0
      %380 = vmatprep.mubr.f32.mxu0 0.0
      %381 = vmatmul.mubr.f32.gmra.mrb[0].mxu0 %v251
      %v382 = vpop.f32.mrb[0].mxu0
      %v383 = vadd.f32 0.0, %v382
      %v384 = vpop.f32.mrb[0].mxu0
      %385 = vmatprep.mubr.f32.mxu0 0.0
      %386 = vmatmul.mubr.f32.gmra.mrb[0].mxu0 %v254
      %v387 = vpop.f32.mrb[0].mxu0
      %v388 = vadd.f32 0.0, %v387
      %v389 = vpop.f32.mrb[0].mxu0
      %390 = vmatprep.mubr.f32.mxu0 0.0
      %391 = vmatmul.mubr.f32.gmra.mrb[0].mxu0 %v257
      %v392 = vpop.f32.mrb[0].mxu0
      %v393 = vadd.f32 0.0, %v392
      %v394 = vpop.f32.mrb[0].mxu0
      %395 = vmatprep.mubr.f32.mxu0 0.0
      %396 = vmatmul.mubr.f32.gmra.mrb[0].mxu0 %v260
      %v397 = vpop.f32.mrb[0].mxu0
      %v398 = vadd.f32 0.0, %v397
      %v399 = vpop.f32.mrb[0].mxu0
      %400 = vmatprep.mubr.f32.mxu0 0.0
      %401 = vmatmul.mubr.f32.gmra.mrb[0].mxu0 %v263
      %v402 = vpop.f32.mrb[0].mxu0
      %v403 = vadd.f32 0.0, %v402
      %v404 = vpop.f32.mrb[0].mxu0
      %405 = vmatprep.mubr.f32.mxu0 0.0
      %406 = vmatmul.mubr.f32.gmra.mrb[0].mxu0 %v266
      %v407 = vpop.f32.mrb[0].mxu0
      %v408 = vadd.f32 0.0, %v407
      %v409 = vpop.f32.mrb[0].mxu0
      %410 = vmatprep.mubr.f32.mxu0 0.0
      %411 = vmatmul.mubr.f32.gmra.mrb[0].mxu0 %v269
      %v412 = vpop.f32.mrb[0].mxu0
      %v413 = vadd.f32 0.0, %v412
      %v414 = vpop.f32.mrb[0].mxu0
      %415 = vdwg.mxu0
      %v416 = vld [vmem:[%s2] sm:$0xff]
      %v417 = vld [vmem:[%s2 + $0x8] sm:$0xff]
      %v418 = vld [vmem:[%s2 + $0x10] sm:$0xff]
      %v419 = vld [vmem:[%s2 + $0x18] sm:$0xff]
      %v420 = vld [vmem:[%s2 + $0x20] sm:$0xff]
      %v421 = vld [vmem:[%s2 + $0x28] sm:$0xff]
      %v422 = vld [vmem:[%s2 + $0x30] sm:$0xff]
      %v423 = vld [vmem:[%s2 + $0x38] sm:$0xff]
      %424 = vmatprep.subr.mxu0 0.0
      %425 = vmatpush1.msra.mxu0 %v416
      %426 = vmatprep.subr.mxu0 0.0
      %427 = vmatpush1.msra.mxu0 %v417
      %428 = vmatprep.subr.mxu0 0.0
      %429 = vmatpush1.msra.mxu0 %v418
      %430 = vmatprep.subr.mxu0 0.0
      %431 = vmatpush1.msra.mxu0 %v419
      %432 = vmatprep.subr.mxu0 0.0
      %433 = vmatpush1.msra.mxu0 %v420
      %434 = vmatprep.subr.mxu0 0.0
      %435 = vmatpush1.msra.mxu0 %v421
      %436 = vmatprep.subr.mxu0 0.0
      %437 = vmatpush1.msra.mxu0 %v422
      %438 = vmatprep.subr.mxu0 0.0
      %439 = vmatpush1.msra.mxu0 %v423
      %440 = vmatprep.subr.mxu0 0.0
      %441 = vmatpush1.msra.mxu0 0.0
      %442 = vmatprep.subr.mxu0 0.0
      %443 = vmatpush1.msra.mxu0 0.0
      %444 = vmatprep.subr.mxu0 0.0
      %445 = vmatpush1.msra.mxu0 0.0
      %446 = vmatprep.subr.mxu0 0.0
      %447 = vmatpush1.msra.mxu0 0.0
      %448 = vmatprep.subr.mxu0 0.0
      %449 = vmatpush1.msra.mxu0 0.0
      %450 = vmatprep.subr.mxu0 0.0
      %451 = vmatpush1.msra.mxu0 0.0
      %452 = vmatprep.subr.mxu0 0.0
      %453 = vmatpush1.msra.mxu0 0.0
      %454 = vmatprep.subr.mxu0 0.0
      %455 = vmatpush1.msra.mxu0 0.0
      %456 = vmatprep.subr.mxu0 0.0
      %457 = vmatpush1.msra.mxu0 0.0
      %458 = vmatprep.subr.mxu0 0.0
      %459 = vmatpush1.msra.mxu0 0.0
      %460 = vmatprep.subr.mxu0 0.0
      %461 = vmatpush1.msra.mxu0 0.0
      %462 = vmatprep.subr.mxu0 0.0
      %463 = vmatpush1.msra.mxu0 0.0
      %464 = vmatprep.subr.mxu0 0.0
      %465 = vmatpush1.msra.mxu0 0.0
      %466 = vmatprep.subr.mxu0 0.0
      %467 = vmatpush1.msra.mxu0 0.0
      %468 = vmatprep.subr.mxu0 0.0
      %469 = vmatpush1.msra.mxu0 0.0
      %470 = vmatprep.subr.mxu0 0.0
      %471 = vmatpush1.msra.mxu0 0.0
      %472 = vmatprep.subr.mxu0 0.0
      %473 = vmatpush1.msra.mxu0 0.0
      %474 = vmatprep.subr.mxu0 0.0
      %475 = vmatpush1.msra.mxu0 0.0
      %476 = vmatprep.subr.mxu0 0.0
      %477 = vmatpush1.msra.mxu0 0.0
      %478 = vmatprep.subr.mxu0 0.0
      %479 = vmatpush1.msra.mxu0 0.0
      %480 = vmatprep.subr.mxu0 0.0
      %481 = vmatpush1.msra.mxu0 0.0
      %482 = vmatprep.subr.mxu0 0.0
      %483 = vmatpush1.msra.mxu0 0.0
      %484 = vmatprep.subr.mxu0 0.0
      %485 = vmatpush1.msra.mxu0 0.0
      %486 = vmatprep.subr.mxu0 0.0
      %487 = vmatpush1.msra.mxu0 0.0
      %488 = vmatprep.mubr.f32.mxu0 0.0
      %489 = vmatmul.mubr.f32.gmra.mrb[0].mxu0 %v224
      %v490 = vpop.f32.mrb[0].mxu0
      %v491 = vadd.f32 0.0, %v490
      %v492 = vpop.f32.mrb[0].mxu0
      %493 = vmatprep.mubr.f32.mxu0 0.0
      %494 = vmatmul.mubr.f32.gmra.mrb[0].mxu0 %v227
      %v495 = vpop.f32.mrb[0].mxu0
      %v496 = vadd.f32 0.0, %v495
      %v497 = vpop.f32.mrb[0].mxu0
      %498 = vmatprep.mubr.f32.mxu0 0.0
      %499 = vmatmul.mubr.f32.gmra.mrb[0].mxu0 %v230
      %v500 = vpop.f32.mrb[0].mxu0
      %v501 = vadd.f32 0.0, %v500
      %v502 = vpop.f32.mrb[0].mxu0
      %503 = vmatprep.mubr.f32.mxu0 0.0
      %504 = vmatmul.mubr.f32.gmra.mrb[0].mxu0 %v233
      %v505 = vpop.f32.mrb[0].mxu0
      %v506 = vadd.f32 0.0, %v505
      %v507 = vpop.f32.mrb[0].mxu0
      %508 = vmatprep.mubr.f32.mxu0 0.0
      %509 = vmatmul.mubr.f32.gmra.mrb[0].mxu0 %v236
      %v510 = vpop.f32.mrb[0].mxu0
      %v511 = vadd.f32 0.0, %v510
      %v512 = vpop.f32.mrb[0].mxu0
      %513 = vmatprep.mubr.f32.mxu0 0.0
      %514 = vmatmul.mubr.f32.gmra.mrb[0].mxu0 %v239
      %v515 = vpop.f32.mrb[0].mxu0
      %v516 = vadd.f32 0.0, %v515
      %v517 = vpop.f32.mrb[0].mxu0
      %518 = vmatprep.mubr.f32.mxu0 0.0
      %519 = vmatmul.mubr.f32.gmra.mrb[0].mxu0 %v242
      %v520 = vpop.f32.mrb[0].mxu0
      %v521 = vadd.f32 0.0, %v520
      %v522 = vpop.f32.mrb[0].mxu0
      %523 = vmatprep.mubr.f32.mxu0 0.0
      %524 = vmatmul.mubr.f32.gmra.mrb[0].mxu0 %v245
      %v525 = vpop.f32.mrb[0].mxu0
      %v526 = vadd.f32 0.0, %v525
      %v527 = vpop.f32.mrb[0].mxu0
      %528 = vmatprep.mubr.f32.mxu0 0.0
      %529 = vmatmul.mubr.f32.gmra.mrb[0].mxu0 %v248
      %v530 = vpop.f32.mrb[0].mxu0
      %v531 = vadd.f32 0.0, %v530
      %v532 = vpop.f32.mrb[0].mxu0
      %533 = vmatprep.mubr.f32.mxu0 0.0
      %534 = vmatmul.mubr.f32.gmra.mrb[0].mxu0 %v251
      %v535 = vpop.f32.mrb[0].mxu0
      %v536 = vadd.f32 0.0, %v535
      %v537 = vpop.f32.mrb[0].mxu0
      %538 = vmatprep.mubr.f32.mxu0 0.0
      %539 = vmatmul.mubr.f32.gmra.mrb[0].mxu0 %v254
      %v540 = vpop.f32.mrb[0].mxu0
      %v541 = vadd.f32 0.0, %v540
      %v542 = vpop.f32.mrb[0].mxu0
      %543 = vmatprep.mubr.f32.mxu0 0.0
      %544 = vmatmul.mubr.f32.gmra.mrb[0].mxu0 %v257
      %v545 = vpop.f32.mrb[0].mxu0
      %v546 = vadd.f32 0.0, %v545
      %v547 = vpop.f32.mrb[0].mxu0
      %548 = vmatprep.mubr.f32.mxu0 0.0
      %549 = vmatmul.mubr.f32.gmra.mrb[0].mxu0 %v260
      %v550 = vpop.f32.mrb[0].mxu0
      %v551 = vadd.f32 0.0, %v550
      %v552 = vpop.f32.mrb[0].mxu0
      %553 = vmatprep.mubr.f32.mxu0 0.0
      %554 = vmatmul.mubr.f32.gmra.mrb[0].mxu0 %v263
      %v555 = vpop.f32.mrb[0].mxu0
      %v556 = vadd.f32 0.0, %v555
      %v557 = vpop.f32.mrb[0].mxu0
      %558 = vmatprep.mubr.f32.mxu0 0.0
      %559 = vmatmul.mubr.f32.gmra.mrb[0].mxu0 %v266
      %v560 = vpop.f32.mrb[0].mxu0
      %v561 = vadd.f32 0.0, %v560
      %v562 = vpop.f32.mrb[0].mxu0
      %563 = vmatprep.mubr.f32.mxu0 0.0
      %564 = vmatmul.mubr.f32.gmra.mrb[0].mxu0 %v269
      %v565 = vpop.f32.mrb[0].mxu0
      %v566 = vadd.f32 0.0, %v565
      %v567 = vpop.f32.mrb[0].mxu0
      %568 = vdwg.mxu0
      %v569 = vld [vmem:[%s3] sm:$0xff]
      %v570 = vld [vmem:[%s3 + $0x8] sm:$0xff]
      %v571 = vld [vmem:[%s3 + $0x10] sm:$0xff]
      %v572 = vld [vmem:[%s3 + $0x18] sm:$0xff]
      %v573 = vld [vmem:[%s3 + $0x20] sm:$0xff]
      %v574 = vld [vmem:[%s3 + $0x28] sm:$0xff]
      %v575 = vld [vmem:[%s3 + $0x30] sm:$0xff]
      %v576 = vld [vmem:[%s3 + $0x38] sm:$0xff]
      %577 = vmatprep.subr.mxu0 0.0
      %578 = vmatpush1.msra.mxu0 %v569
      %579 = vmatprep.subr.mxu0 0.0
      %580 = vmatpush1.msra.mxu0 %v570
      %581 = vmatprep.subr.mxu0 0.0
      %582 = vmatpush1.msra.mxu0 %v571
      %583 = vmatprep.subr.mxu0 0.0
      %584 = vmatpush1.msra.mxu0 %v572
      %585 = vmatprep.subr.mxu0 0.0
      %586 = vmatpush1.msra.mxu0 %v573
      %587 = vmatprep.subr.mxu0 0.0
      %588 = vmatpush1.msra.mxu0 %v574
      %589 = vmatprep.subr.mxu0 0.0
      %590 = vmatpush1.msra.mxu0 %v575
      %591 = vmatprep.subr.mxu0 0.0
      %592 = vmatpush1.msra.mxu0 %v576
      %593 = vmatprep.subr.mxu0 0.0
      %594 = vmatpush1.msra.mxu0 0.0
      %595 = vmatprep.subr.mxu0 0.0
      %596 = vmatpush1.msra.mxu0 0.0
      %597 = vmatprep.subr.mxu0 0.0
      %598 = vmatpush1.msra.mxu0 0.0
      %599 = vmatprep.subr.mxu0 0.0
      %600 = vmatpush1.msra.mxu0 0.0
      %601 = vmatprep.subr.mxu0 0.0
      %602 = vmatpush1.msra.mxu0 0.0
      %603 = vmatprep.subr.mxu0 0.0
      %604 = vmatpush1.msra.mxu0 0.0
      %605 = vmatprep.subr.mxu0 0.0
      %606 = vmatpush1.msra.mxu0 0.0
      %607 = vmatprep.subr.mxu0 0.0
      %608 = vmatpush1.msra.mxu0 0.0
      %609 = vmatprep.subr.mxu0 0.0
      %610 = vmatpush1.msra.mxu0 0.0
      %611 = vmatprep.subr.mxu0 0.0
      %612 = vmatpush1.msra.mxu0 0.0
      %613 = vmatprep.subr.mxu0 0.0
      %614 = vmatpush1.msra.mxu0 0.0
      %615 = vmatprep.subr.mxu0 0.0
      %616 = vmatpush1.msra.mxu0 0.0
      %617 = vmatprep.subr.mxu0 0.0
      %618 = vmatpush1.msra.mxu0 0.0
      %619 = vmatprep.subr.mxu0 0.0
      %620 = vmatpush1.msra.mxu0 0.0
      %621 = vmatprep.subr.mxu0 0.0
      %622 = vmatpush1.msra.mxu0 0.0
      %623 = vmatprep.subr.mxu0 0.0
      %624 = vmatpush1.msra.mxu0 0.0
      %625 = vmatprep.subr.mxu0 0.0
      %626 = vmatpush1.msra.mxu0 0.0
      %627 = vmatprep.subr.mxu0 0.0
      %628 = vmatpush1.msra.mxu0 0.0
      %629 = vmatprep.subr.mxu0 0.0
      %630 = vmatpush1.msra.mxu0 0.0
      %631 = vmatprep.subr.mxu0 0.0
      %632 = vmatpush1.msra.mxu0 0.0
      %633 = vmatprep.subr.mxu0 0.0
      %634 = vmatpush1.msra.mxu0 0.0
      %635 = vmatprep.subr.mxu0 0.0
      %636 = vmatpush1.msra.mxu0 0.0
      %637 = vmatprep.subr.mxu0 0.0
      %638 = vmatpush1.msra.mxu0 0.0
      %639 = vmatprep.subr.mxu0 0.0
      %640 = vmatpush1.msra.mxu0 0.0
      %641 = vmatprep.mubr.f32.mxu0 0.0
      %642 = vmatmul.mubr.f32.gmra.mrb[0].mxu0 %v224
      %v643 = vpop.f32.mrb[0].mxu0
      %v644 = vadd.f32 0.0, %v643
      %v645 = vpop.f32.mrb[0].mxu0
      %646 = vmatprep.mubr.f32.mxu0 0.0
      %647 = vmatmul.mubr.f32.gmra.mrb[0].mxu0 %v227
      %v648 = vpop.f32.mrb[0].mxu0
      %v649 = vadd.f32 0.0, %v648
      %v650 = vpop.f32.mrb[0].mxu0
      %651 = vmatprep.mubr.f32.mxu0 0.0
      %652 = vmatmul.mubr.f32.gmra.mrb[0].mxu0 %v230
      %v653 = vpop.f32.mrb[0].mxu0
      %v654 = vadd.f32 0.0, %v653
      %v655 = vpop.f32.mrb[0].mxu0
      %656 = vmatprep.mubr.f32.mxu0 0.0
      %657 = vmatmul.mubr.f32.gmra.mrb[0].mxu0 %v233
      %v658 = vpop.f32.mrb[0].mxu0
      %v659 = vadd.f32 0.0, %v658
      %v660 = vpop.f32.mrb[0].mxu0
      %661 = vmatprep.mubr.f32.mxu0 0.0
      %662 = vmatmul.mubr.f32.gmra.mrb[0].mxu0 %v236
      %v663 = vpop.f32.mrb[0].mxu0
      %v664 = vadd.f32 0.0, %v663
      %v665 = vpop.f32.mrb[0].mxu0
      %666 = vmatprep.mubr.f32.mxu0 0.0
      %667 = vmatmul.mubr.f32.gmra.mrb[0].mxu0 %v239
      %v668 = vpop.f32.mrb[0].mxu0
      %v669 = vadd.f32 0.0, %v668
      %v670 = vpop.f32.mrb[0].mxu0
      %671 = vmatprep.mubr.f32.mxu0 0.0
      %672 = vmatmul.mubr.f32.gmra.mrb[0].mxu0 %v242
      %v673 = vpop.f32.mrb[0].mxu0
      %v674 = vadd.f32 0.0, %v673
      %v675 = vpop.f32.mrb[0].mxu0
      %676 = vmatprep.mubr.f32.mxu0 0.0
      %677 = vmatmul.mubr.f32.gmra.mrb[0].mxu0 %v245
      %v678 = vpop.f32.mrb[0].mxu0
      %v679 = vadd.f32 0.0, %v678
      %v680 = vpop.f32.mrb[0].mxu0
      %681 = vmatprep.mubr.f32.mxu0 0.0
      %682 = vmatmul.mubr.f32.gmra.mrb[0].mxu0 %v248
      %v683 = vpop.f32.mrb[0].mxu0
      %v684 = vadd.f32 0.0, %v683
      %v685 = vpop.f32.mrb[0].mxu0
      %686 = vmatprep.mubr.f32.mxu0 0.0
      %687 = vmatmul.mubr.f32.gmra.mrb[0].mxu0 %v251
      %v688 = vpop.f32.mrb[0].mxu0
      %v689 = vadd.f32 0.0, %v688
      %v690 = vpop.f32.mrb[0].mxu0
      %691 = vmatprep.mubr.f32.mxu0 0.0
      %692 = vmatmul.mubr.f32.gmra.mrb[0].mxu0 %v254
      %v693 = vpop.f32.mrb[0].mxu0
      %v694 = vadd.f32 0.0, %v693
      %v695 = vpop.f32.mrb[0].mxu0
      %696 = vmatprep.mubr.f32.mxu0 0.0
      %697 = vmatmul.mubr.f32.gmra.mrb[0].mxu0 %v257
      %v698 = vpop.f32.mrb[0].mxu0
      %v699 = vadd.f32 0.0, %v698
      %v700 = vpop.f32.mrb[0].mxu0
      %701 = vmatprep.mubr.f32.mxu0 0.0
      %702 = vmatmul.mubr.f32.gmra.mrb[0].mxu0 %v260
      %v703 = vpop.f32.mrb[0].mxu0
      %v704 = vadd.f32 0.0, %v703
      %v705 = vpop.f32.mrb[0].mxu0
      %706 = vmatprep.mubr.f32.mxu0 0.0
      %707 = vmatmul.mubr.f32.gmra.mrb[0].mxu0 %v263
      %v708 = vpop.f32.mrb[0].mxu0
      %v709 = vadd.f32 0.0, %v708
      %v710 = vpop.f32.mrb[0].mxu0
      %711 = vmatprep.mubr.f32.mxu0 0.0
      %712 = vmatmul.mubr.f32.gmra.mrb[0].mxu0 %v266
      %v713 = vpop.f32.mrb[0].mxu0
      %v714 = vadd.f32 0.0, %v713
      %v715 = vpop.f32.mrb[0].mxu0
      %716 = vmatprep.mubr.f32.mxu0 0.0
      %717 = vmatmul.mubr.f32.gmra.mrb[0].mxu0 %v269
      %v718 = vpop.f32.mrb[0].mxu0
      %v719 = vadd.f32 0.0, %v718
      %v720 = vpop.f32.mrb[0].mxu0
      %721 = vdwg.mxu0
      %vm722 = vcmask 130048
      %v724 = vsel %vm722, %v491, 0
      %v727 = vsel %vm722, %v496, 0
      %v730 = vsel %vm722, %v501, 0
      %v733 = vsel %vm722, %v506, 0
      %v736 = vsel %vm722, %v511, 0
      %v739 = vsel %vm722, %v516, 0
      %v742 = vsel %vm722, %v521, 0
      %v745 = vsel %vm722, %v526, 0
      %v748 = vsel %vm722, %v531, 0
      %v751 = vsel %vm722, %v536, 0
      %v754 = vsel %vm722, %v541, 0
      %v757 = vsel %vm722, %v546, 0
      %v760 = vsel %vm722, %v551, 0
      %v763 = vsel %vm722, %v556, 0
      %v766 = vsel %vm722, %v561, 0
      %v769 = vsel %vm722, %v566, 0
      %v772 = vsel %vm722, %v338, 0
      %v775 = vsel %vm722, %v343, 0
      %v778 = vsel %vm722, %v348, 0
      %v781 = vsel %vm722, %v353, 0
      %v784 = vsel %vm722, %v358, 0
      %v787 = vsel %vm722, %v363, 0
      %v790 = vsel %vm722, %v368, 0
      %v793 = vsel %vm722, %v373, 0
      %v796 = vsel %vm722, %v378, 0
      %v799 = vsel %vm722, %v383, 0
      %v802 = vsel %vm722, %v388, 0
      %v805 = vsel %vm722, %v393, 0
      %v808 = vsel %vm722, %v398, 0
      %v811 = vsel %vm722, %v403, 0
      %v814 = vsel %vm722, %v408, 0
      %v817 = vsel %vm722, %v413, 0
      %819 = vmatprep.subr.mxu0 0.0
      %820 = vmatpush1.xpose.msra.mxu0 %v772
      %821 = vmatprep.subr.mxu0 0.0
      %822 = vmatpush1.xpose.msra.mxu0 %v775
      %823 = vmatprep.subr.mxu0 0.0
      %824 = vmatpush1.xpose.msra.mxu0 %v778
      %825 = vmatprep.subr.mxu0 0.0
      %826 = vmatpush1.xpose.msra.mxu0 %v781
      %827 = vmatprep.subr.mxu0 0.0
      %828 = vmatpush1.xpose.msra.mxu0 %v784
      %829 = vmatprep.subr.mxu0 0.0
      %830 = vmatpush1.xpose.msra.mxu0 %v787
      %831 = vmatprep.subr.mxu0 0.0
      %832 = vmatpush1.xpose.msra.mxu0 %v790
      %833 = vmatprep.subr.mxu0 0.0
      %834 = vmatpush1.xpose.msra.mxu0 %v793
      %835 = vmatprep.subr.mxu0 0.0
      %836 = vmatpush1.xpose.msra.mxu0 %v796
      %837 = vmatprep.subr.mxu0 0.0
      %838 = vmatpush1.xpose.msra.mxu0 %v799
      %839 = vmatprep.subr.mxu0 0.0
      %840 = vmatpush1.xpose.msra.mxu0 %v802
      %841 = vmatprep.subr.mxu0 0.0
      %842 = vmatpush1.xpose.msra.mxu0 %v805
      %843 = vmatprep.subr.mxu0 0.0
      %844 = vmatpush1.xpose.msra.mxu0 %v808
      %845 = vmatprep.subr.mxu0 0.0
      %846 = vmatpush1.xpose.msra.mxu0 %v811
      %847 = vmatprep.subr.mxu0 0.0
      %848 = vmatpush1.xpose.msra.mxu0 %v814
      %849 = vmatprep.subr.mxu0 0.0
      %850 = vmatpush1.xpose.msra.mxu0 %v817
      %851 = vmatprep.subr.mxu0 0.0
      %852 = vmatpush1.xpose.msra.mxu0 0.0
      %853 = vmatprep.subr.mxu0 0.0
      %854 = vmatpush1.xpose.msra.mxu0 0.0
      %855 = vmatprep.subr.mxu0 0.0
      %856 = vmatpush1.xpose.msra.mxu0 0.0
      %857 = vmatprep.subr.mxu0 0.0
      %858 = vmatpush1.xpose.msra.mxu0 0.0
      %859 = vmatprep.subr.mxu0 0.0
      %860 = vmatpush1.xpose.msra.mxu0 0.0
      %861 = vmatprep.subr.mxu0 0.0
      %862 = vmatpush1.xpose.msra.mxu0 0.0
      %863 = vmatprep.subr.mxu0 0.0
      %864 = vmatpush1.xpose.msra.mxu0 0.0
      %865 = vmatprep.subr.mxu0 0.0
      %866 = vmatpush1.xpose.msra.mxu0 0.0
      %867 = vmatprep.subr.mxu0 0.0
      %868 = vmatpush1.xpose.msra.mxu0 0.0
      %869 = vmatprep.subr.mxu0 0.0
      %870 = vmatpush1.xpose.msra.mxu0 0.0
      %871 = vmatprep.subr.mxu0 0.0
      %872 = vmatpush1.xpose.msra.mxu0 0.0
      %873 = vmatprep.subr.mxu0 0.0
      %874 = vmatpush1.xpose.msra.mxu0 0.0
      %875 = vmatprep.subr.mxu0 0.0
      %876 = vmatpush1.xpose.msra.mxu0 0.0
      %877 = vmatprep.subr.mxu0 0.0
      %878 = vmatpush1.xpose.msra.mxu0 0.0
      %879 = vmatprep.subr.mxu0 0.0
      %880 = vmatpush1.xpose.msra.mxu0 0.0
      %881 = vmatprep.subr.mxu0 0.0
      %882 = vmatpush1.xpose.msra.mxu0 0.0
      %883 = vmatprep.mubr.f32.mxu0 0.0
      %884 = vmatmul.mubr.f32.gmra.mrb[0].mxu0 %v724
      %v885 = vpop.f32.mrb[0].mxu0
      %v886 = vadd.f32 0.0, %v885
      %v887 = vpop.f32.mrb[0].mxu0
      %888 = vmatprep.mubr.f32.mxu0 0.0
      %889 = vmatmul.mubr.f32.gmra.mrb[0].mxu0 %v727
      %v890 = vpop.f32.mrb[0].mxu0
      %v891 = vadd.f32 0.0, %v890
      %v892 = vpop.f32.mrb[0].mxu0
      %893 = vmatprep.mubr.f32.mxu0 0.0
      %894 = vmatmul.mubr.f32.gmra.mrb[0].mxu0 %v730
      %v895 = vpop.f32.mrb[0].mxu0
      %v896 = vadd.f32 0.0, %v895
      %v897 = vpop.f32.mrb[0].mxu0
      %898 = vmatprep.mubr.f32.mxu0 0.0
      %899 = vmatmul.mubr.f32.gmra.mrb[0].mxu0 %v733
      %v900 = vpop.f32.mrb[0].mxu0
      %v901 = vadd.f32 0.0, %v900
      %v902 = vpop.f32.mrb[0].mxu0
      %903 = vmatprep.mubr.f32.mxu0 0.0
      %904 = vmatmul.mubr.f32.gmra.mrb[0].mxu0 %v736
      %v905 = vpop.f32.mrb[0].mxu0
      %v906 = vadd.f32 0.0, %v905
      %v907 = vpop.f32.mrb[0].mxu0
      %908 = vmatprep.mubr.f32.mxu0 0.0
      %909 = vmatmul.mubr.f32.gmra.mrb[0].mxu0 %v739
      %v910 = vpop.f32.mrb[0].mxu0
      %v911 = vadd.f32 0.0, %v910
      %v912 = vpop.f32.mrb[0].mxu0
      %913 = vmatprep.mubr.f32.mxu0 0.0
      %914 = vmatmul.mubr.f32.gmra.mrb[0].mxu0 %v742
      %v915 = vpop.f32.mrb[0].mxu0
      %v916 = vadd.f32 0.0, %v915
      %v917 = vpop.f32.mrb[0].mxu0
      %918 = vmatprep.mubr.f32.mxu0 0.0
      %919 = vmatmul.mubr.f32.gmra.mrb[0].mxu0 %v745
      %v920 = vpop.f32.mrb[0].mxu0
      %v921 = vadd.f32 0.0, %v920
      %v922 = vpop.f32.mrb[0].mxu0
      %923 = vmatprep.mubr.f32.mxu0 0.0
      %924 = vmatmul.mubr.f32.gmra.mrb[0].mxu0 %v748
      %v925 = vpop.f32.mrb[0].mxu0
      %v926 = vadd.f32 0.0, %v925
      %v927 = vpop.f32.mrb[0].mxu0
      %928 = vmatprep.mubr.f32.mxu0 0.0
      %929 = vmatmul.mubr.f32.gmra.mrb[0].mxu0 %v751
      %v930 = vpop.f32.mrb[0].mxu0
      %v931 = vadd.f32 0.0, %v930
      %v932 = vpop.f32.mrb[0].mxu0
      %933 = vmatprep.mubr.f32.mxu0 0.0
      %934 = vmatmul.mubr.f32.gmra.mrb[0].mxu0 %v754
      %v935 = vpop.f32.mrb[0].mxu0
      %v936 = vadd.f32 0.0, %v935
      %v937 = vpop.f32.mrb[0].mxu0
      %938 = vmatprep.mubr.f32.mxu0 0.0
      %939 = vmatmul.mubr.f32.gmra.mrb[0].mxu0 %v757
      %v940 = vpop.f32.mrb[0].mxu0
      %v941 = vadd.f32 0.0, %v940
      %v942 = vpop.f32.mrb[0].mxu0
      %943 = vmatprep.mubr.f32.mxu0 0.0
      %944 = vmatmul.mubr.f32.gmra.mrb[0].mxu0 %v760
      %v945 = vpop.f32.mrb[0].mxu0
      %v946 = vadd.f32 0.0, %v945
      %v947 = vpop.f32.mrb[0].mxu0
      %948 = vmatprep.mubr.f32.mxu0 0.0
      %949 = vmatmul.mubr.f32.gmra.mrb[0].mxu0 %v763
      %v950 = vpop.f32.mrb[0].mxu0
      %v951 = vadd.f32 0.0, %v950
      %v952 = vpop.f32.mrb[0].mxu0
      %953 = vmatprep.mubr.f32.mxu0 0.0
      %954 = vmatmul.mubr.f32.gmra.mrb[0].mxu0 %v766
      %v955 = vpop.f32.mrb[0].mxu0
      %v956 = vadd.f32 0.0, %v955
      %v957 = vpop.f32.mrb[0].mxu0
      %958 = vmatprep.mubr.f32.mxu0 0.0
      %959 = vmatmul.mubr.f32.gmra.mrb[0].mxu0 %v769
      %v960 = vpop.f32.mrb[0].mxu0
      %v961 = vadd.f32 0.0, %v960
      %v962 = vpop.f32.mrb[0].mxu0
      %963 = vdwg.mxu0
      %v964 = vmul.f32 %v886, 0.25
      %v965 = vmul.f32 %v891, 0.25
      %v966 = vmul.f32 %v896, 0.25
      %v967 = vmul.f32 %v901, 0.25
      %v968 = vmul.f32 %v906, 0.25
      %v969 = vmul.f32 %v911, 0.25
      %v970 = vmul.f32 %v916, 0.25
      %v971 = vmul.f32 %v921, 0.25
      %v972 = vmul.f32 %v926, 0.25
      %v973 = vmul.f32 %v931, 0.25
      %v974 = vmul.f32 %v936, 0.25
      %v975 = vmul.f32 %v941, 0.25
      %v976 = vmul.f32 %v946, 0.25
      %v977 = vmul.f32 %v951, 0.25
      %v978 = vmul.f32 %v956, 0.25
      %v979 = vmul.f32 %v961, 0.25
      %v980 = vlaneseq
      %v981 = vshrl.u32 %v980, 7
      %v982 = vadd.s32 %v981, 8
      %v983 = vadd.s32 %v981, 16
      %v984 = vadd.s32 %v981, 24
      %v985 = vadd.s32 %v981, 32
      %v986 = vadd.s32 %v981, 40
      %v987 = vadd.s32 %v981, 48
      %v988 = vadd.s32 %v981, 56
      %v989 = vadd.s32 %v981, 64
      %v990 = vadd.s32 %v981, 72
      %v991 = vadd.s32 %v981, 80
      %v992 = vadd.s32 %v981, 88
      %v993 = vadd.s32 %v981, 96
      %v994 = vadd.s32 %v981, 104
      %v995 = vadd.s32 %v981, 112
      %v996 = vadd.s32 %v981, 120
      %v997 = vlaneseq
      %v998 = vand.u32 %v997, 127
      %vm999 = vcmp.le.s32.totalorder %v998, %v981
      %vm1000 = vcmp.le.s32.totalorder %v998, %v982
      %vm1001 = vcmp.le.s32.totalorder %v998, %v983
      %vm1002 = vcmp.le.s32.totalorder %v998, %v984
      %vm1003 = vcmp.le.s32.totalorder %v998, %v985
      %vm1004 = vcmp.le.s32.totalorder %v998, %v986
      %vm1005 = vcmp.le.s32.totalorder %v998, %v987
      %vm1006 = vcmp.le.s32.totalorder %v998, %v988
      %vm1007 = vcmp.le.s32.totalorder %v998, %v989
      %vm1008 = vcmp.le.s32.totalorder %v998, %v990
      %vm1009 = vcmp.le.s32.totalorder %v998, %v991
      %vm1010 = vcmp.le.s32.totalorder %v998, %v992
      %vm1011 = vcmp.le.s32.totalorder %v998, %v993
      %vm1012 = vcmp.le.s32.totalorder %v998, %v994
      %vm1013 = vcmp.le.s32.totalorder %v998, %v995
      %vm1014 = vcmp.le.s32.totalorder %v998, %v996
      %v1015 = vsel %vm999, %v964, -inf
      %v1016 = vsel %vm1000, %v965, -inf
      %v1017 = vsel %vm1001, %v966, -inf
      %v1018 = vsel %vm1002, %v967, -inf
      %v1019 = vsel %vm1003, %v968, -inf
      %v1020 = vsel %vm1004, %v969, -inf
      %v1021 = vsel %vm1005, %v970, -inf
      %v1022 = vsel %vm1006, %v971, -inf
      %v1023 = vsel %vm1007, %v972, -inf
      %v1024 = vsel %vm1008, %v973, -inf
      %v1025 = vsel %vm1009, %v974, -inf
      %v1026 = vsel %vm1010, %v975, -inf
      %v1027 = vsel %vm1011, %v976, -inf
      %v1028 = vsel %vm1012, %v977, -inf
      %v1029 = vsel %vm1013, %v978, -inf
      %v1030 = vsel %vm1014, %v979, -inf
      %1031 = vmax.xlane.f32.xlu0 %v1015
      %v1032 = vpop.xlane.xlu0 %1031
      %1033 = vmax.xlane.f32.xlu0 %v1016
      %v1034 = vpop.xlane.xlu0 %1033
      %1035 = vmax.xlane.f32.xlu0 %v1017
      %v1036 = vpop.xlane.xlu0 %1035
      %1037 = vmax.xlane.f32.xlu0 %v1018
      %v1038 = vpop.xlane.xlu0 %1037
      %1039 = vmax.xlane.f32.xlu0 %v1019
      %v1040 = vpop.xlane.xlu0 %1039
      %1041 = vmax.xlane.f32.xlu0 %v1020
      %v1042 = vpop.xlane.xlu0 %1041
      %1043 = vmax.xlane.f32.xlu0 %v1021
      %v1044 = vpop.xlane.xlu0 %1043
      %1045 = vmax.xlane.f32.xlu0 %v1022
      %v1046 = vpop.xlane.xlu0 %1045
      %1047 = vmax.xlane.f32.xlu0 %v1023
      %v1048 = vpop.xlane.xlu0 %1047
      %1049 = vmax.xlane.f32.xlu0 %v1024
      %v1050 = vpop.xlane.xlu0 %1049
      %1051 = vmax.xlane.f32.xlu0 %v1025
      %v1052 = vpop.xlane.xlu0 %1051
      %1053 = vmax.xlane.f32.xlu0 %v1026
      %v1054 = vpop.xlane.xlu0 %1053
      %1055 = vmax.xlane.f32.xlu0 %v1027
      %v1056 = vpop.xlane.xlu0 %1055
      %1057 = vmax.xlane.f32.xlu0 %v1028
      %v1058 = vpop.xlane.xlu0 %1057
      %1059 = vmax.xlane.f32.xlu0 %v1029
      %v1060 = vpop.xlane.xlu0 %1059
      %1061 = vmax.xlane.f32.xlu0 %v1030
      %v1062 = vpop.xlane.xlu0 %1061
      %v1063 = vsub.f32 %v1015, %v1032
      %v1064 = vsub.f32 %v1016, %v1034
      %v1065 = vsub.f32 %v1017, %v1036
      %v1066 = vsub.f32 %v1018, %v1038
      %v1067 = vsub.f32 %v1019, %v1040
      %v1068 = vsub.f32 %v1020, %v1042
      %v1069 = vsub.f32 %v1021, %v1044
      %v1070 = vsub.f32 %v1022, %v1046
      %v1071 = vsub.f32 %v1023, %v1048
      %v1072 = vsub.f32 %v1024, %v1050
      %v1073 = vsub.f32 %v1025, %v1052
      %v1074 = vsub.f32 %v1026, %v1054
      %v1075 = vsub.f32 %v1027, %v1056
      %v1076 = vsub.f32 %v1028, %v1058
      %v1077 = vsub.f32 %v1029, %v1060
      %v1078 = vsub.f32 %v1030, %v1062
      %v1079 = vmul.f32 %v1063, 1.442695
      %v1080 = vpow.pop %v1079
      %v1081 = vmul.f32 %v1064, 1.442695
      %v1082 = vpow.pop %v1081
      %v1083 = vmul.f32 %v1065, 1.442695
      %v1084 = vpow.pop %v1083
      %v1085 = vmul.f32 %v1066, 1.442695
      %v1086 = vpow.pop %v1085
      %v1087 = vmul.f32 %v1067, 1.442695
      %v1088 = vpow.pop %v1087
      %v1089 = vmul.f32 %v1068, 1.442695
      %v1090 = vpow.pop %v1089
      %v1091 = vmul.f32 %v1069, 1.442695
      %v1092 = vpow.pop %v1091
      %v1093 = vmul.f32 %v1070, 1.442695
      %v1094 = vpow.pop %v1093
      %v1095 = vmul.f32 %v1071, 1.442695
      %v1096 = vpow.pop %v1095
      %v1097 = vmul.f32 %v1072, 1.442695
      %v1098 = vpow.pop %v1097
      %v1099 = vmul.f32 %v1073, 1.442695
      %v1100 = vpow.pop %v1099
      %v1101 = vmul.f32 %v1074, 1.442695
      %v1102 = vpow.pop %v1101
      %v1103 = vmul.f32 %v1075, 1.442695
      %v1104 = vpow.pop %v1103
      %v1105 = vmul.f32 %v1076, 1.442695
      %v1106 = vpow.pop %v1105
      %v1107 = vmul.f32 %v1077, 1.442695
      %v1108 = vpow.pop %v1107
      %v1109 = vmul.f32 %v1078, 1.442695
      %v1110 = vpow.pop %v1109
      %1111 = vadd.xlane.f32.xlu0 %v1080
      %v1112 = vpop.xlane.xlu0 %1111
      %1113 = vadd.xlane.f32.xlu0 %v1082
      %v1114 = vpop.xlane.xlu0 %1113
      %1115 = vadd.xlane.f32.xlu0 %v1084
      %v1116 = vpop.xlane.xlu0 %1115
      %1117 = vadd.xlane.f32.xlu0 %v1086
      %v1118 = vpop.xlane.xlu0 %1117
      %1119 = vadd.xlane.f32.xlu0 %v1088
      %v1120 = vpop.xlane.xlu0 %1119
      %1121 = vadd.xlane.f32.xlu0 %v1090
      %v1122 = vpop.xlane.xlu0 %1121
      %1123 = vadd.xlane.f32.xlu0 %v1092
      %v1124 = vpop.xlane.xlu0 %1123
      %1125 = vadd.xlane.f32.xlu0 %v1094
      %v1126 = vpop.xlane.xlu0 %1125
      %1127 = vadd.xlane.f32.xlu0 %v1096
      %v1128 = vpop.xlane.xlu0 %1127
      %1129 = vadd.xlane.f32.xlu0 %v1098
      %v1130 = vpop.xlane.xlu0 %1129
      %1131 = vadd.xlane.f32.xlu0 %v1100
      %v1132 = vpop.xlane.xlu0 %1131
      %1133 = vadd.xlane.f32.xlu0 %v1102
      %v1134 = vpop.xlane.xlu0 %1133
      %1135 = vadd.xlane.f32.xlu0 %v1104
      %v1136 = vpop.xlane.xlu0 %1135
      %1137 = vadd.xlane.f32.xlu0 %v1106
      %v1138 = vpop.xlane.xlu0 %1137
      %1139 = vadd.xlane.f32.xlu0 %v1108
      %v1140 = vpop.xlane.xlu0 %1139
      %1141 = vadd.xlane.f32.xlu0 %v1110
      %v1142 = vpop.xlane.xlu0 %1141
      %1143 = vmatprep.subr.mxu0 0.0
      %1144 = vmatpush1.msra.mxu0 %v644
      %1145 = vmatprep.subr.mxu0 0.0
      %1146 = vmatpush1.msra.mxu0 %v649
      %1147 = vmatprep.subr.mxu0 0.0
      %1148 = vmatpush1.msra.mxu0 %v654
      %1149 = vmatprep.subr.mxu0 0.0
      %1150 = vmatpush1.msra.mxu0 %v659
      %1151 = vmatprep.subr.mxu0 0.0
      %1152 = vmatpush1.msra.mxu0 %v664
      %1153 = vmatprep.subr.mxu0 0.0
      %1154 = vmatpush1.msra.mxu0 %v669
      %1155 = vmatprep.subr.mxu0 0.0
      %1156 = vmatpush1.msra.mxu0 %v674
      %1157 = vmatprep.subr.mxu0 0.0
      %1158 = vmatpush1.msra.mxu0 %v679
      %1159 = vmatprep.subr.mxu0 0.0
      %1160 = vmatpush1.msra.mxu0 %v684
      %1161 = vmatprep.subr.mxu0 0.0
      %1162 = vmatpush1.msra.mxu0 %v689
      %1163 = vmatprep.subr.mxu0 0.0
      %1164 = vmatpush1.msra.mxu0 %v694
      %1165 = vmatprep.subr.mxu0 0.0
      %1166 = vmatpush1.msra.mxu0 %v699
      %1167 = vmatprep.subr.mxu0 0.0
      %1168 = vmatpush1.msra.mxu0 %v704
      %1169 = vmatprep.subr.mxu0 0.0
      %1170 = vmatpush1.msra.mxu0 %v709
      %1171 = vmatprep.subr.mxu0 0.0
      %1172 = vmatpush1.msra.mxu0 %v714
      %1173 = vmatprep.subr.mxu0 0.0
      %1174 = vmatpush1.msra.mxu0 %v719
      %1175 = vmatprep.subr.mxu0 0.0
      %1176 = vmatpush1.msra.mxu0 0.0
      %1177 = vmatprep.subr.mxu0 0.0
      %1178 = vmatpush1.msra.mxu0 0.0
      %1179 = vmatprep.subr.mxu0 0.0
      %1180 = vmatpush1.msra.mxu0 0.0
      %1181 = vmatprep.subr.mxu0 0.0
      %1182 = vmatpush1.msra.mxu0 0.0
      %1183 = vmatprep.subr.mxu0 0.0
      %1184 = vmatpush1.msra.mxu0 0.0
      %1185 = vmatprep.subr.mxu0 0.0
      %1186 = vmatpush1.msra.mxu0 0.0
      %1187 = vmatprep.subr.mxu0 0.0
      %1188 = vmatpush1.msra.mxu0 0.0
      %1189 = vmatprep.subr.mxu0 0.0
      %1190 = vmatpush1.msra.mxu0 0.0
      %1191 = vmatprep.subr.mxu0 0.0
      %1192 = vmatpush1.msra.mxu0 0.0
      %1193 = vmatprep.subr.mxu0 0.0
      %1194 = vmatpush1.msra.mxu0 0.0
      %1195 = vmatprep.subr.mxu0 0.0
      %1196 = vmatpush1.msra.mxu0 0.0
      %1197 = vmatprep.subr.mxu0 0.0
      %1198 = vmatpush1.msra.mxu0 0.0
      %1199 = vmatprep.subr.mxu0 0.0
      %1200 = vmatpush1.msra.mxu0 0.0
      %1201 = vmatprep.subr.mxu0 0.0
      %1202 = vmatpush1.msra.mxu0 0.0
      %1203 = vmatprep.subr.mxu0 0.0
      %1204 = vmatpush1.msra.mxu0 0.0
      %1205 = vmatprep.subr.mxu0 0.0
      %1206 = vmatpush1.msra.mxu0 0.0
      %1207 = vmatprep.mubr.f32.mxu0 0.0
      %1208 = vmatmul.mubr.f32.gmra.mrb[0].mxu0 %v1080
      %v1209 = vpop.f32.mrb[0].mxu0
      %v1210 = vadd.f32 0.0, %v1209
      %v1211 = vpop.f32.mrb[0].mxu0
      %1212 = vmatprep.mubr.f32.mxu0 0.0
      %1213 = vmatmul.mubr.f32.gmra.mrb[0].mxu0 %v1082
      %v1214 = vpop.f32.mrb[0].mxu0
      %v1215 = vadd.f32 0.0, %v1214
      %v1216 = vpop.f32.mrb[0].mxu0
      %1217 = vmatprep.mubr.f32.mxu0 0.0
      %1218 = vmatmul.mubr.f32.gmra.mrb[0].mxu0 %v1084
      %v1219 = vpop.f32.mrb[0].mxu0
      %v1220 = vadd.f32 0.0, %v1219
      %v1221 = vpop.f32.mrb[0].mxu0
      %1222 = vmatprep.mubr.f32.mxu0 0.0
      %1223 = vmatmul.mubr.f32.gmra.mrb[0].mxu0 %v1086
      %v1224 = vpop.f32.mrb[0].mxu0
      %v1225 = vadd.f32 0.0, %v1224
      %v1226 = vpop.f32.mrb[0].mxu0
      %1227 = vmatprep.mubr.f32.mxu0 0.0
      %1228 = vmatmul.mubr.f32.gmra.mrb[0].mxu0 %v1088
      %v1229 = vpop.f32.mrb[0].mxu0
      %v1230 = vadd.f32 0.0, %v1229
      %v1231 = vpop.f32.mrb[0].mxu0
      %1232 = vmatprep.mubr.f32.mxu0 0.0
      %1233 = vmatmul.mubr.f32.gmra.mrb[0].mxu0 %v1090
      %v1234 = vpop.f32.mrb[0].mxu0
      %v1235 = vadd.f32 0.0, %v1234
      %v1236 = vpop.f32.mrb[0].mxu0
      %1237 = vmatprep.mubr.f32.mxu0 0.0
      %1238 = vmatmul.mubr.f32.gmra.mrb[0].mxu0 %v1092
      %v1239 = vpop.f32.mrb[0].mxu0
      %v1240 = vadd.f32 0.0, %v1239
      %v1241 = vpop.f32.mrb[0].mxu0
      %1242 = vmatprep.mubr.f32.mxu0 0.0
      %1243 = vmatmul.mubr.f32.gmra.mrb[0].mxu0 %v1094
      %v1244 = vpop.f32.mrb[0].mxu0
      %v1245 = vadd.f32 0.0, %v1244
      %v1246 = vpop.f32.mrb[0].mxu0
      %1247 = vmatprep.mubr.f32.mxu0 0.0
      %1248 = vmatmul.mubr.f32.gmra.mrb[0].mxu0 %v1096
      %v1249 = vpop.f32.mrb[0].mxu0
      %v1250 = vadd.f32 0.0, %v1249
      %v1251 = vpop.f32.mrb[0].mxu0
      %1252 = vmatprep.mubr.f32.mxu0 0.0
      %1253 = vmatmul.mubr.f32.gmra.mrb[0].mxu0 %v1098
      %v1254 = vpop.f32.mrb[0].mxu0
      %v1255 = vadd.f32 0.0, %v1254
      %v1256 = vpop.f32.mrb[0].mxu0
      %1257 = vmatprep.mubr.f32.mxu0 0.0
      %1258 = vmatmul.mubr.f32.gmra.mrb[0].mxu0 %v1100
      %v1259 = vpop.f32.mrb[0].mxu0
      %v1260 = vadd.f32 0.0, %v1259
      %v1261 = vpop.f32.mrb[0].mxu0
      %1262 = vmatprep.mubr.f32.mxu0 0.0
      %1263 = vmatmul.mubr.f32.gmra.mrb[0].mxu0 %v1102
      %v1264 = vpop.f32.mrb[0].mxu0
      %v1265 = vadd.f32 0.0, %v1264
      %v1266 = vpop.f32.mrb[0].mxu0
      %1267 = vmatprep.mubr.f32.mxu0 0.0
      %1268 = vmatmul.mubr.f32.gmra.mrb[0].mxu0 %v1104
      %v1269 = vpop.f32.mrb[0].mxu0
      %v1270 = vadd.f32 0.0, %v1269
      %v1271 = vpop.f32.mrb[0].mxu0
      %1272 = vmatprep.mubr.f32.mxu0 0.0
      %1273 = vmatmul.mubr.f32.gmra.mrb[0].mxu0 %v1106
      %v1274 = vpop.f32.mrb[0].mxu0
      %v1275 = vadd.f32 0.0, %v1274
      %v1276 = vpop.f32.mrb[0].mxu0
      %1277 = vmatprep.mubr.f32.mxu0 0.0
      %1278 = vmatmul.mubr.f32.gmra.mrb[0].mxu0 %v1108
      %v1279 = vpop.f32.mrb[0].mxu0
      %v1280 = vadd.f32 0.0, %v1279
      %v1281 = vpop.f32.mrb[0].mxu0
      %1282 = vmatprep.mubr.f32.mxu0 0.0
      %1283 = vmatmul.mubr.f32.gmra.mrb[0].mxu0 %v1110
      %v1284 = vpop.f32.mrb[0].mxu0
      %v1285 = vadd.f32 0.0, %v1284
      %v1286 = vpop.f32.mrb[0].mxu0
      %1287 = vdwg.mxu0
      %v1288 = vrcp.pop %v1112
      %v1289 = vrcp.pop %v1114
      %v1290 = vrcp.pop %v1116
      %v1291 = vrcp.pop %v1118
      %v1292 = vrcp.pop %v1120
      %v1293 = vrcp.pop %v1122
      %v1294 = vrcp.pop %v1124
      %v1295 = vrcp.pop %v1126
      %v1296 = vrcp.pop %v1128
      %v1297 = vrcp.pop %v1130
      %v1298 = vrcp.pop %v1132
      %v1299 = vrcp.pop %v1134
      %v1300 = vrcp.pop %v1136
      %v1301 = vrcp.pop %v1138
      %v1302 = vrcp.pop %v1140
      %v1303 = vrcp.pop %v1142
      %v1304 = vmul.f32 %v1210, %v1288
      %v1305 = vmul.f32 %v1215, %v1289
      %v1306 = vmul.f32 %v1220, %v1290
      %v1307 = vmul.f32 %v1225, %v1291
      %v1308 = vmul.f32 %v1230, %v1292
      %v1309 = vmul.f32 %v1235, %v1293
      %v1310 = vmul.f32 %v1240, %v1294
      %v1311 = vmul.f32 %v1245, %v1295
      %v1312 = vmul.f32 %v1250, %v1296
      %v1313 = vmul.f32 %v1255, %v1297
      %v1314 = vmul.f32 %v1260, %v1298
      %v1315 = vmul.f32 %v1265, %v1299
      %v1316 = vmul.f32 %v1270, %v1300
      %v1317 = vmul.f32 %v1275, %v1301
      %v1318 = vmul.f32 %v1280, %v1302
      %v1319 = vmul.f32 %v1285, %v1303
      %1320 = vst.msk [vmem:[%s197] sm:$0xff] %vm722, %v1304
      %1321 = vst.msk [vmem:[%s197 + $0x8] sm:$0xff] %vm722, %v1305
      %1322 = vst.msk [vmem:[%s197 + $0x10] sm:$0xff] %vm722, %v1306
      %1323 = vst.msk [vmem:[%s197 + $0x18] sm:$0xff] %vm722, %v1307
      %1324 = vst.msk [vmem:[%s197 + $0x20] sm:$0xff] %vm722, %v1308
      %1325 = vst.msk [vmem:[%s197 + $0x28] sm:$0xff] %vm722, %v1309
      %1326 = vst.msk [vmem:[%s197 + $0x30] sm:$0xff] %vm722, %v1310
      %1327 = vst.msk [vmem:[%s197 + $0x38] sm:$0xff] %vm722, %v1311
      %1328 = vst.msk [vmem:[%s197 + $0x40] sm:$0xff] %vm722, %v1312
      %1329 = vst.msk [vmem:[%s197 + $0x48] sm:$0xff] %vm722, %v1313
      %1330 = vst.msk [vmem:[%s197 + $0x50] sm:$0xff] %vm722, %v1314
      %1331 = vst.msk [vmem:[%s197 + $0x58] sm:$0xff] %vm722, %v1315
      %1332 = vst.msk [vmem:[%s197 + $0x60] sm:$0xff] %vm722, %v1316
      %1333 = vst.msk [vmem:[%s197 + $0x68] sm:$0xff] %vm722, %v1317
      %1334 = vst.msk [vmem:[%s197 + $0x70] sm:$0xff] %vm722, %v1318
      %1335 = vst.msk [vmem:[%s197 + $0x78] sm:$0xff] %vm722, %v1319
      %p1336 = scmp.lt.s32.totalorder %s15, 1
      %s1337 = scalar_select %p1336, %s15, 1
      %s1338 = smul.addr %s1337, 16
      %s1339 = smul.addr %s1338, 8
      %s1340 = scalar_lea.vmem %s4, %s1339
      // Predicated region
      $region37: #{tpu_custom_call.1} parent=35 // pred_check
        %p1341 = pneg %p122
      $region38: #{tpu_custom_call.1} parent=35 // pred_check_branch
        %1343 = sbr.rel (%p1341) target = $region40
      $region39: #{tpu_custom_call.1} parent=35 // pred_region
        _
      $region40: #{tpu_custom_call.1} parent=35 // pred_fallthru
        _
    $region36: #{tpu_custom_call.1} parent=5 // pred_fallthru
      _
    %p1344 = scmp.le.s32.totalorder 2, %s10
    // Predicated region
    $region41: #{tpu_custom_call.1} parent=5 // pred_check
      %p1345 = pneg %p1344
    $region42: #{tpu_custom_call.1} parent=5 // pred_check_branch
      %1347 = sbr.rel (%p1345) target = $region44
    $region43: #{tpu_custom_call.1} parent=5 // pred_region
      %s1348 = ssub.s32 %s10, 2
      // Predicated region
      $region45: #{tpu_custom_call.1} parent=43 // pred_check
        %p1349 = pneg %p128
      $region46: #{tpu_custom_call.1} parent=43 // pred_check_branch
        %1351 = sbr.rel (%p1349) target = $region48
      $region47: #{tpu_custom_call.1} parent=43 // pred_region
        %p1352 = scmp.lt.s32.totalorder %s16, 1
        %s1353 = scalar_select %p1352, %s16, 1
        %s1354 = smul.addr %s1353, 16
        %s1355 = smul.addr %s1354, 8
        %s1356 = scalar_lea.vmem %s4, %s1355
      $region48: #{tpu_custom_call.1} parent=43 // pred_fallthru
        _
    $region44: #{tpu_custom_call.1} parent=5 // pred_fallthru
      _
  $region6: #{tpu_custom_call.1} parent=0 // loop_footer
    %s14 = sadd.s32 1, %s10
  $region7: #{tpu_custom_call.1} parent=0 // loop_footer_branch
    %9 = sbr.rel target = $region3
  $region8: #{tpu_custom_call.1} parent=0 // loop_exit
    _

</llo_original>
